<compile_context>
chip_gen: v7x
topology: tpu7x:2x2x1
jax: 0.10.0
libtpu: 0.0.40
codegen_flags: <defaults>
</compile_context>

<pallas_src>
import jax
import jax.numpy as jnp
from jax.experimental import pallas as pl
from jax.experimental.pallas import tpu as pltpu


def _round_up(x, m):
    return ((x + m - 1) // m) * m


def _mlp_kernel(x_ref,
                w0_ref, b0_ref,
                w1_ref, b1_ref,
                w2_ref, b2_ref,
                w3_ref, b3_ref,
                o_ref):
    # Matmul-operand dtype (bf16 or f32) is whatever the wrapper cast W to.
    cdt = w0_ref.dtype

    # Layer 0: (64,6) @ (6,TB) + (64,1) -> ReLU       (f32 accumulate)
    h = jnp.dot(w0_ref[...], x_ref[...].astype(cdt),
                preferred_element_type=jnp.float32)
    h = jnp.maximum(h + b0_ref[...], 0.0)
    # Layer 1: (128,64) @ (64,TB) + (128,1) -> ReLU
    h = jnp.dot(w1_ref[...], h.astype(cdt),
                preferred_element_type=jnp.float32)
    h = jnp.maximum(h + b1_ref[...], 0.0)
    # Layer 2: (64,128) @ (128,TB) + (64,1) -> ReLU
    h = jnp.dot(w2_ref[...], h.astype(cdt),
                preferred_element_type=jnp.float32)
    h = jnp.maximum(h + b2_ref[...], 0.0)
    # Output layer: (6,64) @ (64,TB) + (6,1)  (no activation; dropout = identity in eval)
    out = jnp.dot(w3_ref[...], h.astype(cdt),
                  preferred_element_type=jnp.float32)
    o_ref[...] = (out + b3_ref[...]).astype(o_ref.dtype)


def image_jacobian_net(x, params, tb=2048, use_bf16=True):
    """Fused MLP forward.

    x: (B, 6) float32.
    params: list of (W, b); W shape (out_features, in_features) [PyTorch
            orientation], b shape (out_features, 1).
    tb: requested batch tile (rounded to a multiple of 256).
    use_bf16: cast matmul operands to bf16 (f32 accumulation). False = exact f32.
    """
    B, in_size = x.shape
    out_size = params[-1][0].shape[0]

    # Batch tile: multiple of 256; capped so (a) tiny batches aren't over-padded
    # and (b) moderate batches still give >= 2 grid steps for v7x's two cores.
    tb_req = _round_up(max(tb, 256), 256)
    tb_cap = _round_up(max((B + 1) // 2, 1), 256)
    tb = min(tb_req, tb_cap)
    grid = (pl.cdiv(B, tb),)

    # Feature-major input; no explicit padding — Pallas masks the partial last
    # block and the garbage columns are per-column independent, never stored.
    xt = x.T  # (in_size, B)

    w_dtype = jnp.bfloat16 if use_bf16 else jnp.float32

    flat_args = [xt]
    in_specs = [pl.BlockSpec((in_size, tb), lambda i: (0, i))]
    for w, b in params:
        # Full-array blocks with constant index_maps -> weights/biases are
        # DMA'd once and stay resident in VMEM across the whole batch grid.
        flat_args.append(w.astype(w_dtype))
        flat_args.append(b.astype(jnp.float32))
        in_specs.append(pl.BlockSpec(w.shape, lambda i: (0, 0)))
        in_specs.append(pl.BlockSpec(b.shape, lambda i: (0, 0)))

    out_t = pl.pallas_call(
        _mlp_kernel,
        out_shape=jax.ShapeDtypeStruct((out_size, B), jnp.float32),
        grid=grid,
        in_specs=in_specs,
        out_specs=pl.BlockSpec((out_size, tb), lambda i: (0, i)),
        compiler_params=pltpu.CompilerParams(
            dimension_semantics=("parallel",)),
    )(*flat_args)

    # Back to the conventional (B, out) layout.
    return out_t.T


def init_params(key, input_size=6, hidden_sizes=(64, 128, 64), output_size=6):
    """Deterministic init mimicking nn.Linear default (uniform +/- 1/sqrt(fan_in)).

    Weights kept in PyTorch (out_features, in_features) orientation; biases as
    (out_features, 1) columns for lane-broadcast in the feature-major kernel.
    """
    sizes = [input_size, *hidden_sizes, output_size]
    params = []
    for i in range(len(sizes) - 1):
        fan_in, fan_out = sizes[i], sizes[i + 1]
        key, kw, kb = jax.random.split(key, 3)
        bound = 1.0 / (fan_in ** 0.5)
        w = jax.random.uniform(kw, (fan_out, fan_in), jnp.float32, -bound, bound)
        b = jax.random.uniform(kb, (fan_out, 1), jnp.float32, -bound, bound)
        params.append((w, b))
    return params


def reference_forward(x, params):
    h = x
    n = len(params)
    for i, (w, b) in enumerate(params):
        h = h @ w.T + b.T
        if i < n - 1:
            h = jnp.maximum(h, 0.0)  # dropout is identity in eval mode
    return h


if __name__ == "__main__":
    key = jax.random.PRNGKey(0)
    k_params, k_x1, k_x2 = jax.random.split(key, 3)

    params = init_params(k_params)

    # Case 1: tiny batch (single partial block).
    B1 = 8
    x1 = jax.random.normal(k_x1, (B1, 6), jnp.float32)
    y1_ref = reference_forward(x1, params)

    y1_bf16 = jax.block_until_ready(image_jacobian_net(x1, params, use_bf16=True))
    assert y1_bf16.shape == (B1, 6), y1_bf16.shape
    assert jnp.allclose(y1_bf16, y1_ref, atol=3e-2, rtol=3e-2), "bf16 path mismatch"

    y1_f32 = jax.block_until_ready(image_jacobian_net(x1, params, use_bf16=False))
    assert jnp.allclose(y1_f32, y1_ref, atol=1e-5, rtol=1e-5), "f32 path mismatch"

    # Case 2: multi-step grid with a ragged last tile (exercises the
    # partial-block masking and the >=2-grid-steps (v7x) tiling path).
    B2 = 300
    x2 = jax.random.normal(k_x2, (B2, 6), jnp.float32)
    y2_ref = reference_forward(x2, params)
    y2 = jax.block_until_ready(image_jacobian_net(x2, params, use_bf16=True))
    assert y2.shape == (B2, 6), y2.shape
    assert jnp.allclose(y2, y2_ref, atol=3e-2, rtol=3e-2), "multi-tile mismatch"

    print("KERNEL_OK")
</pallas_src>

<mosaic_0001>
module attributes {stable_mosaic.version = 11 : i64} {
  func.func @_mlp_kernel(%arg0: i32, %arg1: memref<6x256xf32, #tpu.memory_space<vmem>>, %arg2: memref<64x6xbf16, #tpu.memory_space<vmem>>, %arg3: memref<64x1xf32, #tpu.memory_space<vmem>>, %arg4: memref<128x64xbf16, #tpu.memory_space<vmem>>, %arg5: memref<128x1xf32, #tpu.memory_space<vmem>>, %arg6: memref<64x128xbf16, #tpu.memory_space<vmem>>, %arg7: memref<64x1xf32, #tpu.memory_space<vmem>>, %arg8: memref<6x64xbf16, #tpu.memory_space<vmem>>, %arg9: memref<6x1xf32, #tpu.memory_space<vmem>>, %arg10: memref<6x256xf32, #tpu.memory_space<vmem>>) attributes {dimension_semantics = [#tpu.dimension_semantics<parallel>], iteration_bounds = array<i64: 1>, scalar_prefetch = 0 : i64, scratch_operands = 0 : i64, tpu.core_type = #tpu.core_type<tc>, window_params = [{transform_indices = @transform_0, window_bounds = array<i64: 6, 256>}, {pipeline_mode = #tpu.pipeline_mode<synchronous>, transform_indices = @transform_1, window_bounds = array<i64: 64, 6>}, {pipeline_mode = #tpu.pipeline_mode<synchronous>, transform_indices = @transform_2, window_bounds = array<i64: 64, 1>}, {pipeline_mode = #tpu.pipeline_mode<synchronous>, transform_indices = @transform_3, window_bounds = array<i64: 128, 64>}, {pipeline_mode = #tpu.pipeline_mode<synchronous>, transform_indices = @transform_4, window_bounds = array<i64: 128, 1>}, {pipeline_mode = #tpu.pipeline_mode<synchronous>, transform_indices = @transform_5, window_bounds = array<i64: 64, 128>}, {pipeline_mode = #tpu.pipeline_mode<synchronous>, transform_indices = @transform_6, window_bounds = array<i64: 64, 1>}, {pipeline_mode = #tpu.pipeline_mode<synchronous>, transform_indices = @transform_7, window_bounds = array<i64: 6, 64>}, {pipeline_mode = #tpu.pipeline_mode<synchronous>, transform_indices = @transform_8, window_bounds = array<i64: 6, 1>}, {transform_indices = @transform_9, window_bounds = array<i64: 6, 256>}]} {
    %c0 = arith.constant 0 : index
    %c0_0 = arith.constant 0 : index
    %0 = vector.load %arg2[%c0, %c0_0] : memref<64x6xbf16, #tpu.memory_space<vmem>>, vector<64x6xbf16>
    %c0_1 = arith.constant 0 : index
    %c0_2 = arith.constant 0 : index
    %1 = vector.load %arg1[%c0_1, %c0_2] : memref<6x256xf32, #tpu.memory_space<vmem>>, vector<6x256xf32>
    %2 = arith.truncf %1 : vector<6x256xf32> to vector<6x256xbf16>
    %cst = arith.constant dense<0.000000e+00> : vector<64x256xf32>
    %3 = tpu.matmul %0, %2, %cst {dimension_numbers = #tpu.dot_dimension_numbers<[1], [0], [0], [1], [0, 0, 1, 1], [], []>} : vector<64x6xbf16>, vector<6x256xbf16>, vector<64x256xf32> -> vector<64x256xf32>
    %c0_3 = arith.constant 0 : index
    %c0_4 = arith.constant 0 : index
    %4 = vector.load %arg3[%c0_3, %c0_4] : memref<64x1xf32, #tpu.memory_space<vmem>>, vector<64x1xf32>
    %5 = vector.broadcast %4 : vector<64x1xf32> to vector<64x256xf32>
    %6 = arith.addf %3, %5 : vector<64x256xf32>
    %cst_5 = arith.constant 0.000000e+00 : f32
    %7 = vector.broadcast %cst_5 : f32 to vector<64x256xf32>
    %8 = arith.maximumf %6, %7 : vector<64x256xf32>
    %c0_6 = arith.constant 0 : index
    %c0_7 = arith.constant 0 : index
    %9 = vector.load %arg4[%c0_6, %c0_7] : memref<128x64xbf16, #tpu.memory_space<vmem>>, vector<128x64xbf16>
    %10 = arith.truncf %8 : vector<64x256xf32> to vector<64x256xbf16>
    %cst_8 = arith.constant dense<0.000000e+00> : vector<128x256xf32>
    %11 = tpu.matmul %9, %10, %cst_8 {dimension_numbers = #tpu.dot_dimension_numbers<[1], [0], [0], [1], [0, 0, 1, 1], [], []>} : vector<128x64xbf16>, vector<64x256xbf16>, vector<128x256xf32> -> vector<128x256xf32>
    %c0_9 = arith.constant 0 : index
    %c0_10 = arith.constant 0 : index
    %12 = vector.load %arg5[%c0_9, %c0_10] : memref<128x1xf32, #tpu.memory_space<vmem>>, vector<128x1xf32>
    %13 = vector.broadcast %12 : vector<128x1xf32> to vector<128x256xf32>
    %14 = arith.addf %11, %13 : vector<128x256xf32>
    %cst_11 = arith.constant 0.000000e+00 : f32
    %15 = vector.broadcast %cst_11 : f32 to vector<128x256xf32>
    %16 = arith.maximumf %14, %15 : vector<128x256xf32>
    %c0_12 = arith.constant 0 : index
    %c0_13 = arith.constant 0 : index
    %17 = vector.load %arg6[%c0_12, %c0_13] : memref<64x128xbf16, #tpu.memory_space<vmem>>, vector<64x128xbf16>
    %18 = arith.truncf %16 : vector<128x256xf32> to vector<128x256xbf16>
    %cst_14 = arith.constant dense<0.000000e+00> : vector<64x256xf32>
    %19 = tpu.matmul %17, %18, %cst_14 {dimension_numbers = #tpu.dot_dimension_numbers<[1], [0], [0], [1], [0, 0, 1, 1], [], []>} : vector<64x128xbf16>, vector<128x256xbf16>, vector<64x256xf32> -> vector<64x256xf32>
    %c0_15 = arith.constant 0 : index
    %c0_16 = arith.constant 0 : index
    %20 = vector.load %arg7[%c0_15, %c0_16] : memref<64x1xf32, #tpu.memory_space<vmem>>, vector<64x1xf32>
    %21 = vector.broadcast %20 : vector<64x1xf32> to vector<64x256xf32>
    %22 = arith.addf %19, %21 : vector<64x256xf32>
    %cst_17 = arith.constant 0.000000e+00 : f32
    %23 = vector.broadcast %cst_17 : f32 to vector<64x256xf32>
    %24 = arith.maximumf %22, %23 : vector<64x256xf32>
    %c0_18 = arith.constant 0 : index
    %c0_19 = arith.constant 0 : index
    %25 = vector.load %arg8[%c0_18, %c0_19] : memref<6x64xbf16, #tpu.memory_space<vmem>>, vector<6x64xbf16>
    %26 = arith.truncf %24 : vector<64x256xf32> to vector<64x256xbf16>
    %cst_20 = arith.constant dense<0.000000e+00> : vector<6x256xf32>
    %27 = tpu.matmul %25, %26, %cst_20 {dimension_numbers = #tpu.dot_dimension_numbers<[1], [0], [0], [1], [0, 0, 1, 1], [], []>} : vector<6x64xbf16>, vector<64x256xbf16>, vector<6x256xf32> -> vector<6x256xf32>
    %c0_21 = arith.constant 0 : index
    %c0_22 = arith.constant 0 : index
    %28 = vector.load %arg9[%c0_21, %c0_22] : memref<6x1xf32, #tpu.memory_space<vmem>>, vector<6x1xf32>
    %29 = vector.broadcast %28 : vector<6x1xf32> to vector<6x256xf32>
    %30 = arith.addf %27, %29 : vector<6x256xf32>
    %c0_23 = arith.constant 0 : index
    %c0_24 = arith.constant 0 : index
    %31 = vector.load %arg10[%c0_23, %c0_24] : memref<6x256xf32, #tpu.memory_space<vmem>>, vector<6x256xf32>
    tpu.vector_store %arg10[%c0_23, %c0_24], %30 {strides = array<i32>} : memref<6x256xf32, #tpu.memory_space<vmem>>, vector<6x256xf32>,
    return
  }
  func.func @transform_0(%arg0: i32) -> (i32, i32) {
    %c0_i32 = arith.constant 0 : i32
    %c0_i32_0 = arith.constant 0 : i32
    return %c0_i32, %arg0 : i32, i32
  }
  func.func @transform_1(%arg0: i32) -> (i32, i32) {
    %c0_i32 = arith.constant 0 : i32
    %c0_i32_0 = arith.constant 0 : i32
    %c0_i32_1 = arith.constant 0 : i32
    return %c0_i32, %c0_i32_0 : i32, i32
  }
  func.func @transform_2(%arg0: i32) -> (i32, i32) {
    %c0_i32 = arith.constant 0 : i32
    %c0_i32_0 = arith.constant 0 : i32
    %c0_i32_1 = arith.constant 0 : i32
    return %c0_i32, %c0_i32_0 : i32, i32
  }
  func.func @transform_3(%arg0: i32) -> (i32, i32) {
    %c0_i32 = arith.constant 0 : i32
    %c0_i32_0 = arith.constant 0 : i32
    %c0_i32_1 = arith.constant 0 : i32
    return %c0_i32, %c0_i32_0 : i32, i32
  }
  func.func @transform_4(%arg0: i32) -> (i32, i32) {
    %c0_i32 = arith.constant 0 : i32
    %c0_i32_0 = arith.constant 0 : i32
    %c0_i32_1 = arith.constant 0 : i32
    return %c0_i32, %c0_i32_0 : i32, i32
  }
  func.func @transform_5(%arg0: i32) -> (i32, i32) {
    %c0_i32 = arith.constant 0 : i32
    %c0_i32_0 = arith.constant 0 : i32
    %c0_i32_1 = arith.constant 0 : i32
    return %c0_i32, %c0_i32_0 : i32, i32
  }
  func.func @transform_6(%arg0: i32) -> (i32, i32) {
    %c0_i32 = arith.constant 0 : i32
    %c0_i32_0 = arith.constant 0 : i32
    %c0_i32_1 = arith.constant 0 : i32
    return %c0_i32, %c0_i32_0 : i32, i32
  }
  func.func @transform_7(%arg0: i32) -> (i32, i32) {
    %c0_i32 = arith.constant 0 : i32
    %c0_i32_0 = arith.constant 0 : i32
    %c0_i32_1 = arith.constant 0 : i32
    return %c0_i32, %c0_i32_0 : i32, i32
  }
  func.func @transform_8(%arg0: i32) -> (i32, i32) {
    %c0_i32 = arith.constant 0 : i32
    %c0_i32_0 = arith.constant 0 : i32
    %c0_i32_1 = arith.constant 0 : i32
    return %c0_i32, %c0_i32_0 : i32, i32
  }
  func.func @transform_9(%arg0: i32) -> (i32, i32) {
    %c0_i32 = arith.constant 0 : i32
    %c0_i32_0 = arith.constant 0 : i32
    return %c0_i32, %arg0 : i32, i32
  }
}

</mosaic_0001>

<llo_original>
// kernel: tpu_custom_call.1
$region0: #{tpu_custom_call.1}
  #allocation0 [shape = 'u32[]', space=smem, size = 0x4, offset = 0x4, fixed_abs, tag = 'smem constant byte address 0x4 - core index']
  #allocation1 [shape = 'u32[144,128]{1,0:T(1,128)}', space=vmem, size = 0x12000, scoped, tag = 'internal scratch']
  %s0 = inlined_call_operand.vmem [shape: f32[6,8], index: 0, kind: input, shape index: {}]
  %s1 = inlined_call_operand.vmem [shape: bf16[64,6], index: 1, kind: input, shape index: {}]
  %s2 = inlined_call_operand.vmem [shape: f32[64,1], index: 2, kind: input, shape index: {}]
  %s3 = inlined_call_operand.vmem [shape: bf16[128,64], index: 3, kind: input, shape index: {}]
  %s4 = inlined_call_operand.vmem [shape: f32[128,1], index: 4, kind: input, shape index: {}]
  %s5 = inlined_call_operand.vmem [shape: bf16[64,128], index: 5, kind: input, shape index: {}]
  %s6 = inlined_call_operand.vmem [shape: f32[64,1], index: 6, kind: input, shape index: {}]
  %s7 = inlined_call_operand.vmem [shape: bf16[6,64], index: 7, kind: input, shape index: {}]
  %s8 = inlined_call_operand.vmem [shape: f32[6,1], index: 8, kind: input, shape index: {}]
  %s9 = inlined_call_operand.hbm [shape: f32[6,8], index: 9, kind: output, shape index: {}]
  %s10 = sld [smem:[#allocation0]]
  $region46: #{tpu_custom_call.1} parent=0
    _
  %s12 = ssub.s32 1, %s10
  %s13 = scalar_select 0, %s12, %s10
  $region1: #{tpu_custom_call.1} parent=0
    #allocation2 [shape = 'u8[8192]{0}', space=vmem, size = 0x2000, scoped, tag = 'output window, operand 0, single buffered']
    #allocation3 [shape = 's32[1]{0}', space=sflag, size = 0x4, scoped, tag = 'scoped memory for tpu_custom_call.1']
    %14 = vsyncpa [#allocation3], 0
    // Predicated region
    $region2: #{tpu_custom_call.1} parent=1 // pred_check
      _
    $region3: #{tpu_custom_call.1} parent=1 // pred_check_branch
      %16 = sbr.rel (0) target = $region5
    $region4: #{tpu_custom_call.1} parent=1 // pred_region
      _
    $region5: #{tpu_custom_call.1} parent=1 // pred_fallthru
      _
    // Predicated region
    $region6: #{tpu_custom_call.1} parent=1 // pred_check
      _
    $region7: #{tpu_custom_call.1} parent=1 // pred_check_branch
      %18 = sbr.rel (0) target = $region9
    $region8: #{tpu_custom_call.1} parent=1 // pred_region
      _
    $region9: #{tpu_custom_call.1} parent=1 // pred_fallthru
      _
    // Predicated region
    $region10: #{tpu_custom_call.1} parent=1 // pred_check
      _
    $region11: #{tpu_custom_call.1} parent=1 // pred_check_branch
      %20 = sbr.rel (0) target = $region13
    $region12: #{tpu_custom_call.1} parent=1 // pred_region
      _
    $region13: #{tpu_custom_call.1} parent=1 // pred_fallthru
      _
    // Predicated region
    $region14: #{tpu_custom_call.1} parent=1 // pred_check
      _
    $region15: #{tpu_custom_call.1} parent=1 // pred_check_branch
      %22 = sbr.rel (0) target = $region17
    $region16: #{tpu_custom_call.1} parent=1 // pred_region
      _
    $region17: #{tpu_custom_call.1} parent=1 // pred_fallthru
      _
    // Predicated region
    $region18: #{tpu_custom_call.1} parent=1 // pred_check
      _
    $region19: #{tpu_custom_call.1} parent=1 // pred_check_branch
      %24 = sbr.rel (0) target = $region21
    $region20: #{tpu_custom_call.1} parent=1 // pred_region
      _
    $region21: #{tpu_custom_call.1} parent=1 // pred_fallthru
      _
    // Predicated region
    $region22: #{tpu_custom_call.1} parent=1 // pred_check
      _
    $region23: #{tpu_custom_call.1} parent=1 // pred_check_branch
      %26 = sbr.rel (0) target = $region25
    $region24: #{tpu_custom_call.1} parent=1 // pred_region
      _
    $region25: #{tpu_custom_call.1} parent=1 // pred_fallthru
      _
    // Predicated region
    $region26: #{tpu_custom_call.1} parent=1 // pred_check
      _
    $region27: #{tpu_custom_call.1} parent=1 // pred_check_branch
      %28 = sbr.rel (0) target = $region29
    $region28: #{tpu_custom_call.1} parent=1 // pred_region
      _
    $region29: #{tpu_custom_call.1} parent=1 // pred_fallthru
      _
    // Predicated region
    $region30: #{tpu_custom_call.1} parent=1 // pred_check
      _
    $region31: #{tpu_custom_call.1} parent=1 // pred_check_branch
      %30 = sbr.rel (0) target = $region33
    $region32: #{tpu_custom_call.1} parent=1 // pred_region
      _
    $region33: #{tpu_custom_call.1} parent=1 // pred_fallthru
      _
    // Predicated region
    $region34: #{tpu_custom_call.1} parent=1 // pred_check
      _
    $region35: #{tpu_custom_call.1} parent=1 // pred_check_branch
      %32 = sbr.rel (0) target = $region37
    $region36: #{tpu_custom_call.1} parent=1 // pred_region
      _
    $region37: #{tpu_custom_call.1} parent=1 // pred_fallthru
      _
    %v34 = vld [vmem:[%s1] sm:$0xf]
    %v35 = vld [vmem:[%s1 + $0x4] sm:$0xf]
    %v36 = vld [vmem:[%s1 + $0x8] sm:$0xf]
    %v37 = vld [vmem:[%s1 + $0xc] sm:$0xf]
    %v38 = vld [vmem:[%s1 + $0x10] sm:$0xf]
    %v39 = vld [vmem:[%s1 + $0x14] sm:$0xf]
    %v40 = vld [vmem:[%s1 + $0x18] sm:$0xf]
    %v41 = vld [vmem:[%s1 + $0x1c] sm:$0xf]
    %v42 = vld [vmem:[%s0] sm:$0x3f]
    %v43 = vld [vmem:[%s0 + $0x8] sm:$0x3f]
    %v44 = vpack.c.bf16 %v42, %v42
    %v45 = vpack.c.bf16 %v43, %v43
    %v46 = vld [vmem:[%s2] sm:$0xff]
    %v47 = vld [vmem:[%s2 + $0x8] sm:$0xff]
    %v48 = vld [vmem:[%s2 + $0x10] sm:$0xff]
    %v49 = vld [vmem:[%s2 + $0x18] sm:$0xff]
    %v50 = vld [vmem:[%s2 + $0x20] sm:$0xff]
    %v51 = vld [vmem:[%s2 + $0x28] sm:$0xff]
    %v52 = vld [vmem:[%s2 + $0x30] sm:$0xff]
    %v53 = vld [vmem:[%s2 + $0x38] sm:$0xff]
    %55 = vset.pattern.permute.xlu0 0
    %56 = vperm.xlu0 %55, %v46
    %v57 = vpop.permute.xlu0 %56
    %60 = vset.pattern.permute.xlu0 0
    %61 = vperm.xlu0 %60, %v47
    %v62 = vpop.permute.xlu0 %61
    %65 = vset.pattern.permute.xlu0 0
    %66 = vperm.xlu0 %65, %v48
    %v67 = vpop.permute.xlu0 %66
    %70 = vset.pattern.permute.xlu0 0
    %71 = vperm.xlu0 %70, %v49
    %v72 = vpop.permute.xlu0 %71
    %75 = vset.pattern.permute.xlu0 0
    %76 = vperm.xlu0 %75, %v50
    %v77 = vpop.permute.xlu0 %76
    %80 = vset.pattern.permute.xlu0 0
    %81 = vperm.xlu0 %80, %v51
    %v82 = vpop.permute.xlu0 %81
    %85 = vset.pattern.permute.xlu0 0
    %86 = vperm.xlu0 %85, %v52
    %v87 = vpop.permute.xlu0 %86
    %90 = vset.pattern.permute.xlu0 0
    %91 = vperm.xlu0 %90, %v53
    %v92 = vpop.permute.xlu0 %91
    %v102 = vunpack.c.l.b16 %v34
    %v103 = vunpack.c.l.b16 %v35
    %v104 = vunpack.c.l.b16 %v36
    %v105 = vunpack.c.l.b16 %v37
    %v106 = vunpack.c.l.b16 %v38
    %v107 = vunpack.c.l.b16 %v39
    %v108 = vunpack.c.l.b16 %v40
    %v109 = vunpack.c.l.b16 %v41
    %v110 = vpack.c.b16 %v103, %v102
    %v111 = vpack.c.b16 %v105, %v104
    %v112 = vpack.c.b16 %v107, %v106
    %v113 = vpack.c.b16 %v109, %v108
    %vm114 = vcmask 48128
    %v116 = vsel %vm114, %v110, 0
    %v119 = vsel %vm114, %v111, 0
    %v122 = vsel %vm114, %v112, 0
    %v125 = vsel %vm114, %v113, 0
    %vm127 = vcmask 1042432
    %v129 = vsel %vm127, %v44, 0
    %v132 = vsel %vm127, %v45, 0
    %134 = vmatprep.subr.bf16.mxu0 %v132
    %135 = vmatpush1.bf16.msra.mxu0 %v129
    %136 = vmatprep.subr.bf16.mxu0 0
    %137 = vmatpush1.bf16.msra.mxu0 0
    %138 = vmatprep.subr.bf16.mxu0 0
    %139 = vmatpush1.bf16.msra.mxu0 0
    %140 = vmatprep.subr.bf16.mxu0 0
    %141 = vmatpush1.bf16.msra.mxu0 0
    %142 = vmatprep.subr.bf16.mxu0 0
    %143 = vmatpush1.bf16.msra.mxu0 0
    %144 = vmatprep.subr.bf16.mxu0 0
    %145 = vmatpush1.bf16.msra.mxu0 0
    %146 = vmatprep.subr.bf16.mxu0 0
    %147 = vmatpush1.bf16.msra.mxu0 0
    %148 = vmatprep.subr.bf16.mxu0 0
    %149 = vmatpush1.bf16.msra.mxu0 0
    %150 = vmatprep.subr.bf16.mxu0 0
    %151 = vmatpush1.bf16.msra.mxu0 0
    %152 = vmatprep.subr.bf16.mxu0 0
    %153 = vmatpush1.bf16.msra.mxu0 0
    %154 = vmatprep.subr.bf16.mxu0 0
    %155 = vmatpush1.bf16.msra.mxu0 0
    %156 = vmatprep.subr.bf16.mxu0 0
    %157 = vmatpush1.bf16.msra.mxu0 0
    %158 = vmatprep.subr.bf16.mxu0 0
    %159 = vmatpush1.bf16.msra.mxu0 0
    %160 = vmatprep.subr.bf16.mxu0 0
    %161 = vmatpush1.bf16.msra.mxu0 0
    %162 = vmatprep.subr.bf16.mxu0 0
    %163 = vmatpush1.bf16.msra.mxu0 0
    %164 = vmatprep.subr.bf16.mxu0 0
    %165 = vmatpush1.bf16.msra.mxu0 0
    %166 = vmatprep.mubr.bf16.mxu0 0
    %167 = vmatmul.mubr.bf16.gmra.mrb[0].mxu0 %v116
    %v168 = vpop.f32.mrb[0].mxu0
    %v169 = vadd.f32 %v57, %v168
    %v170 = vpop.f32.mrb[0].mxu0
    %v171 = vadd.f32 %v57, %v170
    %v172 = vpop.f32.mrb[0].mxu0
    %v173 = vadd.f32 %v62, %v172
    %v174 = vpop.f32.mrb[0].mxu0
    %v175 = vadd.f32 %v62, %v174
    %176 = vmatprep.mubr.bf16.mxu0 0
    %177 = vmatmul.mubr.bf16.gmra.mrb[0].mxu0 %v119
    %v178 = vpop.f32.mrb[0].mxu0
    %v179 = vadd.f32 %v67, %v178
    %v180 = vpop.f32.mrb[0].mxu0
    %v181 = vadd.f32 %v67, %v180
    %v182 = vpop.f32.mrb[0].mxu0
    %v183 = vadd.f32 %v72, %v182
    %v184 = vpop.f32.mrb[0].mxu0
    %v185 = vadd.f32 %v72, %v184
    %186 = vmatprep.mubr.bf16.mxu0 0
    %187 = vmatmul.mubr.bf16.gmra.mrb[0].mxu0 %v122
    %v188 = vpop.f32.mrb[0].mxu0
    %v189 = vadd.f32 %v77, %v188
    %v190 = vpop.f32.mrb[0].mxu0
    %v191 = vadd.f32 %v77, %v190
    %v192 = vpop.f32.mrb[0].mxu0
    %v193 = vadd.f32 %v82, %v192
    %v194 = vpop.f32.mrb[0].mxu0
    %v195 = vadd.f32 %v82, %v194
    %196 = vmatprep.mubr.bf16.mxu0 0
    %197 = vmatmul.mubr.bf16.gmra.mrb[0].mxu0 %v125
    %v198 = vpop.f32.mrb[0].mxu0
    %v199 = vadd.f32 %v87, %v198
    %v200 = vpop.f32.mrb[0].mxu0
    %v201 = vadd.f32 %v87, %v200
    %v202 = vpop.f32.mrb[0].mxu0
    %v203 = vadd.f32 %v92, %v202
    %v204 = vpop.f32.mrb[0].mxu0
    %v205 = vadd.f32 %v92, %v204
    %206 = vdwg.mxu0
    %v207 = vmax.f32 %v169, 0.0
    %v208 = vmax.f32 %v171, 0.0
    %v209 = vmax.f32 %v173, 0.0
    %v210 = vmax.f32 %v175, 0.0
    %v211 = vmax.f32 %v179, 0.0
    %v212 = vmax.f32 %v181, 0.0
    %v213 = vmax.f32 %v183, 0.0
    %v214 = vmax.f32 %v185, 0.0
    %v215 = vmax.f32 %v189, 0.0
    %v216 = vmax.f32 %v191, 0.0
    %v217 = vmax.f32 %v193, 0.0
    %v218 = vmax.f32 %v195, 0.0
    %v219 = vmax.f32 %v199, 0.0
    %v220 = vmax.f32 %v201, 0.0
    %v221 = vmax.f32 %v203, 0.0
    %v222 = vmax.f32 %v205, 0.0
    %v223 = vld [vmem:[%s3] sm:$0xf]
    %v224 = vld [vmem:[%s3 + $0x4] sm:$0xf]
    %v225 = vld [vmem:[%s3 + $0x8] sm:$0xf]
    %v226 = vld [vmem:[%s3 + $0xc] sm:$0xf]
    %v227 = vld [vmem:[%s3 + $0x10] sm:$0xf]
    %v228 = vld [vmem:[%s3 + $0x14] sm:$0xf]
    %v229 = vld [vmem:[%s3 + $0x18] sm:$0xf]
    %v230 = vld [vmem:[%s3 + $0x1c] sm:$0xf]
    %v231 = vld [vmem:[%s3 + $0x20] sm:$0xf]
    %v232 = vld [vmem:[%s3 + $0x24] sm:$0xf]
    %v233 = vld [vmem:[%s3 + $0x28] sm:$0xf]
    %v234 = vld [vmem:[%s3 + $0x2c] sm:$0xf]
    %v235 = vld [vmem:[%s3 + $0x30] sm:$0xf]
    %v236 = vld [vmem:[%s3 + $0x34] sm:$0xf]
    %v237 = vld [vmem:[%s3 + $0x38] sm:$0xf]
    %v238 = vld [vmem:[%s3 + $0x3c] sm:$0xf]
    %v239 = vpack.c.bf16 %v209, %v207
    %v240 = vpack.c.bf16 %v210, %v208
    %v241 = vpack.c.bf16 %v213, %v211
    %v242 = vpack.c.bf16 %v214, %v212
    %v243 = vpack.c.bf16 %v217, %v215
    %v244 = vpack.c.bf16 %v218, %v216
    %v245 = vpack.c.bf16 %v221, %v219
    %v246 = vpack.c.bf16 %v222, %v220
    %v247 = vld [vmem:[%s4] sm:$0xff]
    %v248 = vld [vmem:[%s4 + $0x8] sm:$0xff]
    %v249 = vld [vmem:[%s4 + $0x10] sm:$0xff]
    %v250 = vld [vmem:[%s4 + $0x18] sm:$0xff]
    %v251 = vld [vmem:[%s4 + $0x20] sm:$0xff]
    %v252 = vld [vmem:[%s4 + $0x28] sm:$0xff]
    %v253 = vld [vmem:[%s4 + $0x30] sm:$0xff]
    %v254 = vld [vmem:[%s4 + $0x38] sm:$0xff]
    %v255 = vld [vmem:[%s4 + $0x40] sm:$0xff]
    %v256 = vld [vmem:[%s4 + $0x48] sm:$0xff]
    %v257 = vld [vmem:[%s4 + $0x50] sm:$0xff]
    %v258 = vld [vmem:[%s4 + $0x58] sm:$0xff]
    %v259 = vld [vmem:[%s4 + $0x60] sm:$0xff]
    %v260 = vld [vmem:[%s4 + $0x68] sm:$0xff]
    %v261 = vld [vmem:[%s4 + $0x70] sm:$0xff]
    %v262 = vld [vmem:[%s4 + $0x78] sm:$0xff]
    %264 = vset.pattern.permute.xlu0 0
    %265 = vperm.xlu0 %264, %v247
    %v266 = vpop.permute.xlu0 %265
    %269 = vset.pattern.permute.xlu0 0
    %270 = vperm.xlu0 %269, %v248
    %v271 = vpop.permute.xlu0 %270
    %274 = vset.pattern.permute.xlu0 0
    %275 = vperm.xlu0 %274, %v249
    %v276 = vpop.permute.xlu0 %275
    %279 = vset.pattern.permute.xlu0 0
    %280 = vperm.xlu0 %279, %v250
    %v281 = vpop.permute.xlu0 %280
    %284 = vset.pattern.permute.xlu0 0
    %285 = vperm.xlu0 %284, %v251
    %v286 = vpop.permute.xlu0 %285
    %289 = vset.pattern.permute.xlu0 0
    %290 = vperm.xlu0 %289, %v252
    %v291 = vpop.permute.xlu0 %290
    %294 = vset.pattern.permute.xlu0 0
    %295 = vperm.xlu0 %294, %v253
    %v296 = vpop.permute.xlu0 %295
    %299 = vset.pattern.permute.xlu0 0
    %300 = vperm.xlu0 %299, %v254
    %v301 = vpop.permute.xlu0 %300
    %304 = vset.pattern.permute.xlu0 0
    %305 = vperm.xlu0 %304, %v255
    %v306 = vpop.permute.xlu0 %305
    %309 = vset.pattern.permute.xlu0 0
    %310 = vperm.xlu0 %309, %v256
    %v311 = vpop.permute.xlu0 %310
    %314 = vset.pattern.permute.xlu0 0
    %315 = vperm.xlu0 %314, %v257
    %v316 = vpop.permute.xlu0 %315
    %319 = vset.pattern.permute.xlu0 0
    %320 = vperm.xlu0 %319, %v258
    %v321 = vpop.permute.xlu0 %320
    %324 = vset.pattern.permute.xlu0 0
    %325 = vperm.xlu0 %324, %v259
    %v326 = vpop.permute.xlu0 %325
    %329 = vset.pattern.permute.xlu0 0
    %330 = vperm.xlu0 %329, %v260
    %v331 = vpop.permute.xlu0 %330
    %334 = vset.pattern.permute.xlu0 0
    %335 = vperm.xlu0 %334, %v261
    %v336 = vpop.permute.xlu0 %335
    %339 = vset.pattern.permute.xlu0 0
    %340 = vperm.xlu0 %339, %v262
    %v341 = vpop.permute.xlu0 %340
    %v359 = vunpack.c.l.b16 %v223
    %v360 = vunpack.c.l.b16 %v224
    %v361 = vunpack.c.l.b16 %v225
    %v362 = vunpack.c.l.b16 %v226
    %v363 = vunpack.c.l.b16 %v227
    %v364 = vunpack.c.l.b16 %v228
    %v365 = vunpack.c.l.b16 %v229
    %v366 = vunpack.c.l.b16 %v230
    %v367 = vunpack.c.l.b16 %v231
    %v368 = vunpack.c.l.b16 %v232
    %v369 = vunpack.c.l.b16 %v233
    %v370 = vunpack.c.l.b16 %v234
    %v371 = vunpack.c.l.b16 %v235
    %v372 = vunpack.c.l.b16 %v236
    %v373 = vunpack.c.l.b16 %v237
    %v374 = vunpack.c.l.b16 %v238
    %v375 = vpack.c.b16 %v360, %v359
    %v376 = vpack.c.b16 %v362, %v361
    %v377 = vpack.c.b16 %v364, %v363
    %v378 = vpack.c.b16 %v366, %v365
    %v379 = vpack.c.b16 %v368, %v367
    %v380 = vpack.c.b16 %v370, %v369
    %v381 = vpack.c.b16 %v372, %v371
    %v382 = vpack.c.b16 %v374, %v373
    %vm383 = vcmask 523264
    %v385 = vsel %vm383, %v375, 0
    %v388 = vsel %vm383, %v376, 0
    %v391 = vsel %vm383, %v377, 0
    %v394 = vsel %vm383, %v378, 0
    %v397 = vsel %vm383, %v379, 0
    %v400 = vsel %vm383, %v380, 0
    %v403 = vsel %vm383, %v381, 0
    %v406 = vsel %vm383, %v382, 0
    %408 = vmatprep.subr.bf16.mxu0 %v240
    %409 = vmatpush1.bf16.msra.mxu0 %v239
    %410 = vmatprep.subr.bf16.mxu0 %v242
    %411 = vmatpush1.bf16.msra.mxu0 %v241
    %412 = vmatprep.subr.bf16.mxu0 %v244
    %413 = vmatpush1.bf16.msra.mxu0 %v243
    %414 = vmatprep.subr.bf16.mxu0 %v246
    %415 = vmatpush1.bf16.msra.mxu0 %v245
    %416 = vmatprep.subr.bf16.mxu0 0
    %417 = vmatpush1.bf16.msra.mxu0 0
    %418 = vmatprep.subr.bf16.mxu0 0
    %419 = vmatpush1.bf16.msra.mxu0 0
    %420 = vmatprep.subr.bf16.mxu0 0
    %421 = vmatpush1.bf16.msra.mxu0 0
    %422 = vmatprep.subr.bf16.mxu0 0
    %423 = vmatpush1.bf16.msra.mxu0 0
    %424 = vmatprep.subr.bf16.mxu0 0
    %425 = vmatpush1.bf16.msra.mxu0 0
    %426 = vmatprep.subr.bf16.mxu0 0
    %427 = vmatpush1.bf16.msra.mxu0 0
    %428 = vmatprep.subr.bf16.mxu0 0
    %429 = vmatpush1.bf16.msra.mxu0 0
    %430 = vmatprep.subr.bf16.mxu0 0
    %431 = vmatpush1.bf16.msra.mxu0 0
    %432 = vmatprep.subr.bf16.mxu0 0
    %433 = vmatpush1.bf16.msra.mxu0 0
    %434 = vmatprep.subr.bf16.mxu0 0
    %435 = vmatpush1.bf16.msra.mxu0 0
    %436 = vmatprep.subr.bf16.mxu0 0
    %437 = vmatpush1.bf16.msra.mxu0 0
    %438 = vmatprep.subr.bf16.mxu0 0
    %439 = vmatpush1.bf16.msra.mxu0 0
    %440 = vmatprep.mubr.bf16.mxu0 0
    %441 = vmatmul.mubr.bf16.gmra.mrb[0].mxu0 %v385
    %v442 = vpop.f32.mrb[0].mxu0
    %v443 = vadd.f32 %v266, %v442
    %v444 = vpop.f32.mrb[0].mxu0
    %v445 = vadd.f32 %v266, %v444
    %v446 = vpop.f32.mrb[0].mxu0
    %v447 = vadd.f32 %v271, %v446
    %v448 = vpop.f32.mrb[0].mxu0
    %v449 = vadd.f32 %v271, %v448
    %450 = vmatprep.mubr.bf16.mxu0 0
    %451 = vmatmul.mubr.bf16.gmra.mrb[0].mxu0 %v388
    %v452 = vpop.f32.mrb[0].mxu0
    %v453 = vadd.f32 %v276, %v452
    %v454 = vpop.f32.mrb[0].mxu0
    %v455 = vadd.f32 %v276, %v454
    %v456 = vpop.f32.mrb[0].mxu0
    %v457 = vadd.f32 %v281, %v456
    %v458 = vpop.f32.mrb[0].mxu0
    %v459 = vadd.f32 %v281, %v458
    %460 = vmatprep.mubr.bf16.mxu0 0
    %461 = vmatmul.mubr.bf16.gmra.mrb[0].mxu0 %v391
    %v462 = vpop.f32.mrb[0].mxu0
    %v463 = vadd.f32 %v286, %v462
    %v464 = vpop.f32.mrb[0].mxu0
    %v465 = vadd.f32 %v286, %v464
    %v466 = vpop.f32.mrb[0].mxu0
    %v467 = vadd.f32 %v291, %v466
    %v468 = vpop.f32.mrb[0].mxu0
    %v469 = vadd.f32 %v291, %v468
    %470 = vmatprep.mubr.bf16.mxu0 0
    %471 = vmatmul.mubr.bf16.gmra.mrb[0].mxu0 %v394
    %v472 = vpop.f32.mrb[0].mxu0
    %v473 = vadd.f32 %v296, %v472
    %v474 = vpop.f32.mrb[0].mxu0
    %v475 = vadd.f32 %v296, %v474
    %v476 = vpop.f32.mrb[0].mxu0
    %v477 = vadd.f32 %v301, %v476
    %v478 = vpop.f32.mrb[0].mxu0
    %v479 = vadd.f32 %v301, %v478
    %480 = vmatprep.mubr.bf16.mxu0 0
    %481 = vmatmul.mubr.bf16.gmra.mrb[0].mxu0 %v397
    %v482 = vpop.f32.mrb[0].mxu0
    %v483 = vadd.f32 %v306, %v482
    %v484 = vpop.f32.mrb[0].mxu0
    %v485 = vadd.f32 %v306, %v484
    %v486 = vpop.f32.mrb[0].mxu0
    %v487 = vadd.f32 %v311, %v486
    %v488 = vpop.f32.mrb[0].mxu0
    %v489 = vadd.f32 %v311, %v488
    %490 = vmatprep.mubr.bf16.mxu0 0
    %491 = vmatmul.mubr.bf16.gmra.mrb[0].mxu0 %v400
    %v492 = vpop.f32.mrb[0].mxu0
    %v493 = vadd.f32 %v316, %v492
    %v494 = vpop.f32.mrb[0].mxu0
    %v495 = vadd.f32 %v316, %v494
    %v496 = vpop.f32.mrb[0].mxu0
    %v497 = vadd.f32 %v321, %v496
    %v498 = vpop.f32.mrb[0].mxu0
    %v499 = vadd.f32 %v321, %v498
    %500 = vmatprep.mubr.bf16.mxu0 0
    %501 = vmatmul.mubr.bf16.gmra.mrb[0].mxu0 %v403
    %v502 = vpop.f32.mrb[0].mxu0
    %v503 = vadd.f32 %v326, %v502
    %v504 = vpop.f32.mrb[0].mxu0
    %v505 = vadd.f32 %v326, %v504
    %v506 = vpop.f32.mrb[0].mxu0
    %v507 = vadd.f32 %v331, %v506
    %v508 = vpop.f32.mrb[0].mxu0
    %v509 = vadd.f32 %v331, %v508
    %510 = vmatprep.mubr.bf16.mxu0 0
    %511 = vmatmul.mubr.bf16.gmra.mrb[0].mxu0 %v406
    %v512 = vpop.f32.mrb[0].mxu0
    %v513 = vadd.f32 %v336, %v512
    %v514 = vpop.f32.mrb[0].mxu0
    %v515 = vadd.f32 %v336, %v514
    %v516 = vpop.f32.mrb[0].mxu0
    %v517 = vadd.f32 %v341, %v516
    %v518 = vpop.f32.mrb[0].mxu0
    %v519 = vadd.f32 %v341, %v518
    %520 = vdwg.mxu0
    %v521 = vmax.f32 %v443, 0.0
    %v522 = vmax.f32 %v445, 0.0
    %v523 = vmax.f32 %v447, 0.0
    %v524 = vmax.f32 %v449, 0.0
    %v525 = vmax.f32 %v453, 0.0
    %v526 = vmax.f32 %v455, 0.0
    %v527 = vmax.f32 %v457, 0.0
    %v528 = vmax.f32 %v459, 0.0
    %v529 = vmax.f32 %v463, 0.0
    %v530 = vmax.f32 %v465, 0.0
    %v531 = vmax.f32 %v467, 0.0
    %v532 = vmax.f32 %v469, 0.0
    %v533 = vmax.f32 %v473, 0.0
    %v534 = vmax.f32 %v475, 0.0
    %v535 = vmax.f32 %v477, 0.0
    %v536 = vmax.f32 %v479, 0.0
    %v537 = vmax.f32 %v483, 0.0
    %v538 = vmax.f32 %v485, 0.0
    %v539 = vmax.f32 %v487, 0.0
    %v540 = vmax.f32 %v489, 0.0
    %v541 = vmax.f32 %v493, 0.0
    %v542 = vmax.f32 %v495, 0.0
    %v543 = vmax.f32 %v497, 0.0
    %v544 = vmax.f32 %v499, 0.0
    %v545 = vmax.f32 %v503, 0.0
    %v546 = vmax.f32 %v505, 0.0
    %v547 = vmax.f32 %v507, 0.0
    %v548 = vmax.f32 %v509, 0.0
    %v549 = vmax.f32 %v513, 0.0
    %v550 = vmax.f32 %v515, 0.0
    %v551 = vmax.f32 %v517, 0.0
    %v552 = vmax.f32 %v519, 0.0
    %v553 = vld [vmem:[%s5] sm:$0xf]
    %v554 = vld [vmem:[%s5 + $0x4] sm:$0xf]
    %v555 = vld [vmem:[%s5 + $0x8] sm:$0xf]
    %v556 = vld [vmem:[%s5 + $0xc] sm:$0xf]
    %v557 = vld [vmem:[%s5 + $0x10] sm:$0xf]
    %v558 = vld [vmem:[%s5 + $0x14] sm:$0xf]
    %v559 = vld [vmem:[%s5 + $0x18] sm:$0xf]
    %v560 = vld [vmem:[%s5 + $0x1c] sm:$0xf]
    %v561 = vpack.c.bf16 %v523, %v521
    %v562 = vpack.c.bf16 %v524, %v522
    %v563 = vpack.c.bf16 %v527, %v525
    %v564 = vpack.c.bf16 %v528, %v526
    %v565 = vpack.c.bf16 %v531, %v529
    %v566 = vpack.c.bf16 %v532, %v530
    %v567 = vpack.c.bf16 %v535, %v533
    %v568 = vpack.c.bf16 %v536, %v534
    %v569 = vpack.c.bf16 %v539, %v537
    %v570 = vpack.c.bf16 %v540, %v538
    %v571 = vpack.c.bf16 %v543, %v541
    %v572 = vpack.c.bf16 %v544, %v542
    %v573 = vpack.c.bf16 %v547, %v545
    %v574 = vpack.c.bf16 %v548, %v546
    %v575 = vpack.c.bf16 %v551, %v549
    %v576 = vpack.c.bf16 %v552, %v550
    %v577 = vld [vmem:[%s6] sm:$0xff]
    %v578 = vld [vmem:[%s6 + $0x8] sm:$0xff]
    %v579 = vld [vmem:[%s6 + $0x10] sm:$0xff]
    %v580 = vld [vmem:[%s6 + $0x18] sm:$0xff]
    %v581 = vld [vmem:[%s6 + $0x20] sm:$0xff]
    %v582 = vld [vmem:[%s6 + $0x28] sm:$0xff]
    %v583 = vld [vmem:[%s6 + $0x30] sm:$0xff]
    %v584 = vld [vmem:[%s6 + $0x38] sm:$0xff]
    %586 = vset.pattern.permute.xlu0 0
    %587 = vperm.xlu0 %586, %v577
    %v588 = vpop.permute.xlu0 %587
    %591 = vset.pattern.permute.xlu0 0
    %592 = vperm.xlu0 %591, %v578
    %v593 = vpop.permute.xlu0 %592
    %596 = vset.pattern.permute.xlu0 0
    %597 = vperm.xlu0 %596, %v579
    %v598 = vpop.permute.xlu0 %597
    %601 = vset.pattern.permute.xlu0 0
    %602 = vperm.xlu0 %601, %v580
    %v603 = vpop.permute.xlu0 %602
    %606 = vset.pattern.permute.xlu0 0
    %607 = vperm.xlu0 %606, %v581
    %v608 = vpop.permute.xlu0 %607
    %611 = vset.pattern.permute.xlu0 0
    %612 = vperm.xlu0 %611, %v582
    %v613 = vpop.permute.xlu0 %612
    %616 = vset.pattern.permute.xlu0 0
    %617 = vperm.xlu0 %616, %v583
    %v618 = vpop.permute.xlu0 %617
    %621 = vset.pattern.permute.xlu0 0
    %622 = vperm.xlu0 %621, %v584
    %v623 = vpop.permute.xlu0 %622
    %v633 = vunpack.c.l.b16 %v553
    %v634 = vunpack.c.l.b16 %v554
    %v635 = vunpack.c.l.b16 %v555
    %v636 = vunpack.c.l.b16 %v556
    %v637 = vunpack.c.l.b16 %v557
    %v638 = vunpack.c.l.b16 %v558
    %v639 = vunpack.c.l.b16 %v559
    %v640 = vunpack.c.l.b16 %v560
    %v641 = vpack.c.b16 %v634, %v633
    %v642 = vpack.c.b16 %v636, %v635
    %v643 = vpack.c.b16 %v638, %v637
    %v644 = vpack.c.b16 %v640, %v639
    %649 = vmatprep.subr.bf16.mxu0 %v562
    %650 = vmatpush1.bf16.msra.mxu0 %v561
    %651 = vmatprep.subr.bf16.mxu0 %v564
    %652 = vmatpush1.bf16.msra.mxu0 %v563
    %653 = vmatprep.subr.bf16.mxu0 %v566
    %654 = vmatpush1.bf16.msra.mxu0 %v565
    %655 = vmatprep.subr.bf16.mxu0 %v568
    %656 = vmatpush1.bf16.msra.mxu0 %v567
    %657 = vmatprep.subr.bf16.mxu0 %v570
    %658 = vmatpush1.bf16.msra.mxu0 %v569
    %659 = vmatprep.subr.bf16.mxu0 %v572
    %660 = vmatpush1.bf16.msra.mxu0 %v571
    %661 = vmatprep.subr.bf16.mxu0 %v574
    %662 = vmatpush1.bf16.msra.mxu0 %v573
    %663 = vmatprep.subr.bf16.mxu0 %v576
    %664 = vmatpush1.bf16.msra.mxu0 %v575
    %665 = vmatprep.subr.bf16.mxu0 0
    %666 = vmatpush1.bf16.msra.mxu0 0
    %667 = vmatprep.subr.bf16.mxu0 0
    %668 = vmatpush1.bf16.msra.mxu0 0
    %669 = vmatprep.subr.bf16.mxu0 0
    %670 = vmatpush1.bf16.msra.mxu0 0
    %671 = vmatprep.subr.bf16.mxu0 0
    %672 = vmatpush1.bf16.msra.mxu0 0
    %673 = vmatprep.subr.bf16.mxu0 0
    %674 = vmatpush1.bf16.msra.mxu0 0
    %675 = vmatprep.subr.bf16.mxu0 0
    %676 = vmatpush1.bf16.msra.mxu0 0
    %677 = vmatprep.subr.bf16.mxu0 0
    %678 = vmatpush1.bf16.msra.mxu0 0
    %679 = vmatprep.subr.bf16.mxu0 0
    %680 = vmatpush1.bf16.msra.mxu0 0
    %681 = vmatprep.mubr.bf16.mxu0 0
    %682 = vmatmul.mubr.bf16.gmra.mrb[0].mxu0 %v641
    %v683 = vpop.f32.mrb[0].mxu0
    %v684 = vadd.f32 %v588, %v683
    %v685 = vpop.f32.mrb[0].mxu0
    %v686 = vadd.f32 %v588, %v685
    %v687 = vpop.f32.mrb[0].mxu0
    %v688 = vadd.f32 %v593, %v687
    %v689 = vpop.f32.mrb[0].mxu0
    %v690 = vadd.f32 %v593, %v689
    %691 = vmatprep.mubr.bf16.mxu0 0
    %692 = vmatmul.mubr.bf16.gmra.mrb[0].mxu0 %v642
    %v693 = vpop.f32.mrb[0].mxu0
    %v694 = vadd.f32 %v598, %v693
    %v695 = vpop.f32.mrb[0].mxu0
    %v696 = vadd.f32 %v598, %v695
    %v697 = vpop.f32.mrb[0].mxu0
    %v698 = vadd.f32 %v603, %v697
    %v699 = vpop.f32.mrb[0].mxu0
    %v700 = vadd.f32 %v603, %v699
    %701 = vmatprep.mubr.bf16.mxu0 0
    %702 = vmatmul.mubr.bf16.gmra.mrb[0].mxu0 %v643
    %v703 = vpop.f32.mrb[0].mxu0
    %v704 = vadd.f32 %v608, %v703
    %v705 = vpop.f32.mrb[0].mxu0
    %v706 = vadd.f32 %v608, %v705
    %v707 = vpop.f32.mrb[0].mxu0
    %v708 = vadd.f32 %v613, %v707
    %v709 = vpop.f32.mrb[0].mxu0
    %v710 = vadd.f32 %v613, %v709
    %711 = vmatprep.mubr.bf16.mxu0 0
    %712 = vmatmul.mubr.bf16.gmra.mrb[0].mxu0 %v644
    %v713 = vpop.f32.mrb[0].mxu0
    %v714 = vadd.f32 %v618, %v713
    %v715 = vpop.f32.mrb[0].mxu0
    %v716 = vadd.f32 %v618, %v715
    %v717 = vpop.f32.mrb[0].mxu0
    %v718 = vadd.f32 %v623, %v717
    %v719 = vpop.f32.mrb[0].mxu0
    %v720 = vadd.f32 %v623, %v719
    %721 = vdwg.mxu0
    %v722 = vmax.f32 %v684, 0.0
    %v723 = vmax.f32 %v686, 0.0
    %v724 = vmax.f32 %v688, 0.0
    %v725 = vmax.f32 %v690, 0.0
    %v726 = vmax.f32 %v694, 0.0
    %v727 = vmax.f32 %v696, 0.0
    %v728 = vmax.f32 %v698, 0.0
    %v729 = vmax.f32 %v700, 0.0
    %v730 = vmax.f32 %v704, 0.0
    %v731 = vmax.f32 %v706, 0.0
    %v732 = vmax.f32 %v708, 0.0
    %v733 = vmax.f32 %v710, 0.0
    %v734 = vmax.f32 %v714, 0.0
    %v735 = vmax.f32 %v716, 0.0
    %v736 = vmax.f32 %v718, 0.0
    %v737 = vmax.f32 %v720, 0.0
    %v738 = vld [vmem:[%s7] sm:$0x7]
    %v739 = vpack.c.bf16 %v724, %v722
    %v740 = vpack.c.bf16 %v725, %v723
    %v741 = vpack.c.bf16 %v728, %v726
    %v742 = vpack.c.bf16 %v729, %v727
    %v743 = vpack.c.bf16 %v732, %v730
    %v744 = vpack.c.bf16 %v733, %v731
    %v745 = vpack.c.bf16 %v736, %v734
    %v746 = vpack.c.bf16 %v737, %v735
    %v747 = vld [vmem:[%s8] sm:$0x3f]
    %749 = vset.pattern.permute.xlu0 0
    %750 = vperm.xlu0 %749, %v747
    %v751 = vpop.permute.xlu0 %750
    %v754 = vsel %vm383, %v738, 0
    %756 = vmatprep.subr.bf16.mxu0 %v740
    %757 = vmatpush1.bf16.msra.mxu0 %v739
    %758 = vmatprep.subr.bf16.mxu0 %v742
    %759 = vmatpush1.bf16.msra.mxu0 %v741
    %760 = vmatprep.subr.bf16.mxu0 %v744
    %761 = vmatpush1.bf16.msra.mxu0 %v743
    %762 = vmatprep.subr.bf16.mxu0 %v746
    %763 = vmatpush1.bf16.msra.mxu0 %v745
    %764 = vmatprep.subr.bf16.mxu0 0
    %765 = vmatpush1.bf16.msra.mxu0 0
    %766 = vmatprep.subr.bf16.mxu0 0
    %767 = vmatpush1.bf16.msra.mxu0 0
    %768 = vmatprep.subr.bf16.mxu0 0
    %769 = vmatpush1.bf16.msra.mxu0 0
    %770 = vmatprep.subr.bf16.mxu0 0
    %771 = vmatpush1.bf16.msra.mxu0 0
    %772 = vmatprep.subr.bf16.mxu0 0
    %773 = vmatpush1.bf16.msra.mxu0 0
    %774 = vmatprep.subr.bf16.mxu0 0
    %775 = vmatpush1.bf16.msra.mxu0 0
    %776 = vmatprep.subr.bf16.mxu0 0
    %777 = vmatpush1.bf16.msra.mxu0 0
    %778 = vmatprep.subr.bf16.mxu0 0
    %779 = vmatpush1.bf16.msra.mxu0 0
    %780 = vmatprep.subr.bf16.mxu0 0
    %781 = vmatpush1.bf16.msra.mxu0 0
    %782 = vmatprep.subr.bf16.mxu0 0
    %783 = vmatpush1.bf16.msra.mxu0 0
    %784 = vmatprep.subr.bf16.mxu0 0
    %785 = vmatpush1.bf16.msra.mxu0 0
    %786 = vmatprep.subr.bf16.mxu0 0
    %787 = vmatpush1.bf16.msra.mxu0 0
    %788 = vmatprep.mubr.bf16.mxu0 0
    %789 = vmatmul.mubr.bf16.gmra.mrb[0].mxu0 %v754
    %v790 = vpop.f32.mrb[0].mxu0
    %v791 = vadd.f32 %v751, %v790
    %v792 = vpop.f32.mrb[0].mxu0
    %v793 = vadd.f32 %v751, %v792
    %v794 = vpop.f32.mrb[0].mxu0
    %v795 = vpop.f32.mrb[0].mxu0
    %796 = vdwg.mxu0
    %797 = vst [vmem:[#allocation2] sm:$0x3f] %v791
    %798 = vst [vmem:[#allocation2 + $0x8] sm:$0x3f] %v793
    // Predicated region
    $region38: #{tpu_custom_call.1} parent=1 // pred_check
      _
    $region39: #{tpu_custom_call.1} parent=1 // pred_check_branch
      %800 = sbr.rel (0) target = $region41
    $region40: #{tpu_custom_call.1} parent=1 // pred_region
      %s802 = ssub.s32 256, 128
      %803 = vsyncadd [#allocation3], %s802
      %s805 = sshll.u32 [#allocation2], 4
      %s806 = int_to_ptr.vmem [resolvable:$true] %s805
      %808 = dma.vmem_to_hbm [thread:$0]  %s806, 128, %s9, [#allocation3]
    $region41: #{tpu_custom_call.1} parent=1 // pred_fallthru
      _
    // Predicated region
    $region42: #{tpu_custom_call.1} parent=1 // pred_check
      _
    $region43: #{tpu_custom_call.1} parent=1 // pred_check_branch
      %810 = sbr.rel (0) target = $region45
    $region44: #{tpu_custom_call.1} parent=1 // pred_region
      %811 = dma.done [#allocation3], 256
    $region45: #{tpu_custom_call.1} parent=1 // pred_fallthru
      _
    %812 = vsyncpa [#allocation3], 1

</llo_original>
